<compile_context>
chip_gen: v5e
topology: v5e:2x2
jax: 0.10.0
libtpu: 0.0.40
codegen_flags: <defaults>
</compile_context>

<pallas_src>
import functools

import jax
import jax.numpy as jnp
from jax.experimental import pallas as pl
from jax.experimental.pallas import tpu as pltpu


# ----------------------------------------------------------------------------
# Tiled fused matmul + bias + LeakyReLU kernel
# ----------------------------------------------------------------------------
def _round_up(x, m):
    return (x + m - 1) // m * m


def _pick_tile(dim, pref, align):
    r = _round_up(dim, align)
    return r if r <= pref else pref          # pref is a multiple of align


def _pad2d(a, rows, cols):
    r, c = a.shape
    if r == rows and c == cols:
        return a
    return jnp.pad(a, ((0, rows - r), (0, cols - c)))


def _mm_bias_act_kernel(x_ref, w_ref, b_ref, o_ref, acc_ref, *, leaky_slope):
    @pl.when(pl.program_id(2) == 0)
    def _init():
        acc_ref[...] = jnp.zeros_like(acc_ref)

    acc_ref[...] += jnp.dot(x_ref[...], w_ref[...],
                            preferred_element_type=jnp.float32)

    @pl.when(pl.program_id(2) == pl.num_programs(2) - 1)
    def _finalize():
        r = acc_ref[...] + b_ref[...]                       # (1, tn) broadcast
        if leaky_slope is not None:
            r = jnp.where(r >= 0.0, r, leaky_slope * r)
        o_ref[...] = r.astype(o_ref.dtype)


def matmul_bias_act(x, w, b, leaky_slope=None, out_dtype=jnp.float32,
                    tm_pref=512, tn_pref=256, tk_pref=2048):
    """leaky_relu(x @ w + b): bf16 MXU operands, f32 accumulation, tiled grid."""
    M, K = x.shape
    K2, N = w.shape
    assert K == K2, (K, K2)

    tm = _pick_tile(M, tm_pref, 8)
    tn = _pick_tile(N, tn_pref, 128)
    tk = _pick_tile(K, tk_pref, 128)
    Mp, Np, Kp = _round_up(M, tm), _round_up(N, tn), _round_up(K, tk)

    xp = _pad2d(x.astype(jnp.bfloat16), Mp, Kp)
    wp = _pad2d(w.astype(jnp.bfloat16), Kp, Np)
    bp = _pad2d(b.reshape(1, N).astype(jnp.float32), 1, Np)

    kernel = functools.partial(_mm_bias_act_kernel, leaky_slope=leaky_slope)
    out = pl.pallas_call(
        kernel,
        out_shape=jax.ShapeDtypeStruct((Mp, Np), out_dtype),
        grid_spec=pltpu.PrefetchScalarGridSpec(
            num_scalar_prefetch=0,
            grid=(Mp // tm, Np // tn, Kp // tk),
            in_specs=[
                pl.BlockSpec((tm, tk), lambda i, j, k: (i, k)),
                pl.BlockSpec((tk, tn), lambda i, j, k: (k, j)),
                pl.BlockSpec((1, tn), lambda i, j, k: (0, j)),
            ],
            out_specs=pl.BlockSpec((tm, tn), lambda i, j, k: (i, j)),
            scratch_shapes=[pltpu.VMEM((tm, tn), jnp.float32)],
        ),
        compiler_params=pltpu.CompilerParams(
            dimension_semantics=("parallel", "parallel", "arbitrary"),
            vmem_limit_bytes=32 * 1024 * 1024,
        ),
    )(xp, wp, bp)
    if Mp != M or Np != N:
        out = out[:M, :N]
    return out


# ----------------------------------------------------------------------------
# Conv2d via im2col (bf16 glue) + Pallas matmul kernel (MXU hot path)
# ----------------------------------------------------------------------------
def _im2col(x_nhwc, kh, kw, stride, pad):
    B, H, W, C = x_nhwc.shape
    xp = jnp.pad(x_nhwc, ((0, 0), (pad, pad), (pad, pad), (0, 0)))
    Ho = (H + 2 * pad - kh) // stride + 1
    Wo = (W + 2 * pad - kw) // stride + 1
    cols = []
    for i in range(kh):
        for j in range(kw):
            cols.append(xp[:, i:i + stride * Ho:stride, j:j + stride * Wo:stride, :])
    patches = jnp.stack(cols, axis=3)                      # (B, Ho, Wo, kh*kw, C)
    return patches.reshape(B * Ho * Wo, kh * kw * C), Ho, Wo


def conv2d_leaky(x_nhwc, w_mat, b, kh, kw, stride, pad, cout, leaky_slope):
    """PyTorch-semantics Conv2d (+ LeakyReLU), NHWC activations, pre-folded weight."""
    cols, Ho, Wo = _im2col(x_nhwc.astype(jnp.bfloat16), kh, kw, stride, pad)
    out = matmul_bias_act(cols, w_mat, b, leaky_slope=leaky_slope,
                          out_dtype=jnp.bfloat16)
    return out.reshape(x_nhwc.shape[0], Ho, Wo, cout)


# ----------------------------------------------------------------------------
# Full forward pass (mirrors CGanCnnDiscriminator.forward)
# ----------------------------------------------------------------------------
def cgan_cnn_discriminator(params, images_nchw, labels):
    B = images_nchw.shape[0]

    # labels_reshape was precomputed for all 10 classes (prepare_params); just gather.
    img = jnp.transpose(images_nchw, (0, 2, 3, 1)).astype(jnp.bfloat16)   # NHWC (B,28,28,1)
    lab = jnp.take(params["label_table"], labels, axis=0).astype(jnp.bfloat16)
    x = jnp.concatenate([img, lab], axis=-1)                              # (B,28,28,2)

    x = conv2d_leaky(x, params["c1_wm"], params["c1_b"], 4, 4, 2, 1, 64, 0.2)    # (B,14,14,64)
    x = conv2d_leaky(x, params["c2_wm"], params["c2_b"], 4, 4, 2, 1, 128, 0.2)   # (B,7,7,128)
    x = conv2d_leaky(x, params["c3_wm"], params["c3_b"], 3, 3, 1, 1, 256, 0.2)   # (B,7,7,256)

    # fc weight columns were pre-permuted to NHWC flatten order -> no transpose here.
    x = x.reshape(B, 7 * 7 * 256)                                          # (B, 12544)
    return matmul_bias_act(x, params["fc_wm"], params["fc_b"],
                           leaky_slope=None, out_dtype=jnp.float32)        # (B, 1)


# ----------------------------------------------------------------------------
# Parameters: raw PyTorch-layout init + one-time folding/precompute
# ----------------------------------------------------------------------------
def init_params(key, embedding_dim=100):
    ks = jax.random.split(key, 11)
    s = 0.05
    return {
        "emb":   jax.random.normal(ks[0], (10, embedding_dim), jnp.float32) * s,
        "lab_w": jax.random.normal(ks[1], (1 * 28 * 28, embedding_dim), jnp.float32) * s,
        "lab_b": jax.random.normal(ks[2], (1 * 28 * 28,), jnp.float32) * s,
        "c1_w":  jax.random.normal(ks[3], (64, 2, 4, 4), jnp.float32) * s,
        "c1_b":  jax.random.normal(ks[4], (64,), jnp.float32) * s,
        "c2_w":  jax.random.normal(ks[5], (128, 64, 4, 4), jnp.float32) * s,
        "c2_b":  jax.random.normal(ks[6], (128,), jnp.float32) * s,
        "c3_w":  jax.random.normal(ks[7], (256, 128, 3, 3), jnp.float32) * s,
        "c3_b":  jax.random.normal(ks[8], (256,), jnp.float32) * s,
        "fc_w":  jax.random.normal(ks[9], (1, 256 * 7 * 7), jnp.float32) * s,
        "fc_b":  jax.random.normal(ks[10], (1,), jnp.float32) * s,
    }


def prepare_params(raw):
    """One-time weight folding (layout fixes + bf16 cast + label-table precompute)."""
    def conv_mat(w_oihw):
        co, ci, kh, kw = w_oihw.shape
        # (Cout,Cin,kh,kw) -> (kh,kw,Cin,Cout) -> (kh*kw*Cin, Cout); matches im2col order.
        return jnp.transpose(w_oihw, (2, 3, 1, 0)).reshape(kh * kw * ci, co).astype(jnp.bfloat16)

    # torch Flatten is (C,H,W); our activations flatten NHWC (H,W,C): permute columns once.
    fc_wm = jnp.transpose(raw["fc_w"].reshape(1, 256, 7, 7), (2, 3, 1, 0))
    fc_wm = fc_wm.reshape(7 * 7 * 256, 1).astype(jnp.bfloat16)

    # Embedding -> Linear -> Unflatten depends only on the class id (10 classes):
    # precompute all label images once with the Pallas matmul kernel.
    lab_wm = jnp.transpose(raw["lab_w"]).astype(jnp.bfloat16)              # (E, 784)
    table = matmul_bias_act(raw["emb"].astype(jnp.bfloat16), lab_wm, raw["lab_b"],
                            leaky_slope=None, out_dtype=jnp.float32)       # (10, 784)
    table = table.reshape(10, 28, 28, 1)                                   # NHWC label image

    return {
        "label_table": table,
        "c1_wm": conv_mat(raw["c1_w"]), "c1_b": raw["c1_b"].astype(jnp.float32),
        "c2_wm": conv_mat(raw["c2_w"]), "c2_b": raw["c2_b"].astype(jnp.float32),
        "c3_wm": conv_mat(raw["c3_w"]), "c3_b": raw["c3_b"].astype(jnp.float32),
        "fc_wm": fc_wm, "fc_b": raw["fc_b"].astype(jnp.float32),
    }


if __name__ == "__main__":
    key = jax.random.PRNGKey(0)
    k_params, k_img, k_lab = jax.random.split(key, 3)

    params = prepare_params(init_params(k_params))

    B = 2
    images = jax.random.normal(k_img, (B, 1, 28, 28), jnp.float32)   # NCHW, like PyTorch
    labels = jax.random.randint(k_lab, (B,), 0, 10, jnp.int32)

    fwd = jax.jit(cgan_cnn_discriminator)
    out = fwd(params, images, labels)
    jax.block_until_ready(out)

    assert out.shape == (B, 1), out.shape
    assert out.dtype == jnp.float32
    print("KERNEL_OK")
</pallas_src>

<mosaic_0001>
module attributes {stable_mosaic.version = 11 : i64} {
  func.func @_mm_bias_act_kernel(%arg0: i32, %arg1: i32, %arg2: i32, %arg3: memref<16x128xbf16, #tpu.memory_space<vmem>>, %arg4: memref<128x256xbf16, #tpu.memory_space<vmem>>, %arg5: memref<1x256xf32, #tpu.memory_space<vmem>>, %arg6: memref<16x256xf32, #tpu.memory_space<vmem>>, %arg7: memref<16x256xf32, #tpu.memory_space<vmem>>) attributes {dimension_semantics = [#tpu.dimension_semantics<parallel>, #tpu.dimension_semantics<parallel>, #tpu.dimension_semantics<arbitrary>], iteration_bounds = array<i64: 1, 4, 1>, scalar_prefetch = 0 : i64, scratch_operands = 1 : i64, tpu.core_type = #tpu.core_type<tc>, window_params = [{transform_indices = @transform_0, window_bounds = array<i64: 16, 128>}, {transform_indices = @transform_1, window_bounds = array<i64: 128, 256>}, {transform_indices = @transform_2, window_bounds = array<i64: 1, 256>}, {transform_indices = @transform_3, window_bounds = array<i64: 16, 256>}]} {
    %c0_i32 = arith.constant 0 : i32
    %0 = arith.cmpi eq, %arg2, %c0_i32 : i32
    %1 = arith.extui %0 : i1 to i32
    %c0_i32_0 = arith.constant 0 : i32
    %2 = arith.cmpi ne, %1, %c0_i32_0 : i32
    scf.if %2 {
      %cst_10 = arith.constant 0.000000e+00 : f32
      %12 = vector.broadcast %cst_10 : f32 to vector<16x256xf32>
      %c0_11 = arith.constant 0 : index
      %c0_12 = arith.constant 0 : index
      %13 = vector.load %arg7[%c0_11, %c0_12] : memref<16x256xf32, #tpu.memory_space<vmem>>, vector<16x256xf32>
      tpu.vector_store %arg7[%c0_11, %c0_12], %12 {strides = array<i32>} : memref<16x256xf32, #tpu.memory_space<vmem>>, vector<16x256xf32>,
    } else {
    }
    %c0 = arith.constant 0 : index
    %c0_1 = arith.constant 0 : index
    %3 = vector.load %arg7[%c0, %c0_1] : memref<16x256xf32, #tpu.memory_space<vmem>>, vector<16x256xf32>
    %c0_2 = arith.constant 0 : index
    %c0_3 = arith.constant 0 : index
    %4 = vector.load %arg3[%c0_2, %c0_3] : memref<16x128xbf16, #tpu.memory_space<vmem>>, vector<16x128xbf16>
    %c0_4 = arith.constant 0 : index
    %c0_5 = arith.constant 0 : index
    %5 = vector.load %arg4[%c0_4, %c0_5] : memref<128x256xbf16, #tpu.memory_space<vmem>>, vector<128x256xbf16>
    %cst = arith.constant dense<0.000000e+00> : vector<16x256xf32>
    %6 = tpu.matmul %4, %5, %cst {dimension_numbers = #tpu.dot_dimension_numbers<[1], [0], [0], [1], [0, 0, 1, 1], [], []>} : vector<16x128xbf16>, vector<128x256xbf16>, vector<16x256xf32> -> vector<16x256xf32>
    %7 = arith.addf %3, %6 : vector<16x256xf32>
    %c0_6 = arith.constant 0 : index
    %c0_7 = arith.constant 0 : index
    %8 = vector.load %arg7[%c0_6, %c0_7] : memref<16x256xf32, #tpu.memory_space<vmem>>, vector<16x256xf32>
    tpu.vector_store %arg7[%c0_6, %c0_7], %7 {strides = array<i32>} : memref<16x256xf32, #tpu.memory_space<vmem>>, vector<16x256xf32>,
    %c0_i32_8 = arith.constant 0 : i32
    %9 = arith.cmpi eq, %arg2, %c0_i32_8 : i32
    %10 = arith.extui %9 : i1 to i32
    %c0_i32_9 = arith.constant 0 : i32
    %11 = arith.cmpi ne, %10, %c0_i32_9 : i32
    scf.if %11 {
      %c0_10 = arith.constant 0 : index
      %c0_11 = arith.constant 0 : index
      %12 = vector.load %arg7[%c0_10, %c0_11] : memref<16x256xf32, #tpu.memory_space<vmem>>, vector<16x256xf32>
      %c0_12 = arith.constant 0 : index
      %c0_13 = arith.constant 0 : index
      %13 = vector.load %arg5[%c0_12, %c0_13] : memref<1x256xf32, #tpu.memory_space<vmem>>, vector<1x256xf32>
      %14 = vector.broadcast %13 : vector<1x256xf32> to vector<16x256xf32>
      %15 = arith.addf %12, %14 : vector<16x256xf32>
      %c0_14 = arith.constant 0 : index
      %c0_15 = arith.constant 0 : index
      %16 = vector.load %arg6[%c0_14, %c0_15] : memref<16x256xf32, #tpu.memory_space<vmem>>, vector<16x256xf32>
      tpu.vector_store %arg6[%c0_14, %c0_15], %15 {strides = array<i32>} : memref<16x256xf32, #tpu.memory_space<vmem>>, vector<16x256xf32>,
    } else {
    }
    return
  }
  func.func @transform_0(%arg0: i32, %arg1: i32, %arg2: i32) -> (i32, i32) {
    %c0_i32 = arith.constant 0 : i32
    return %arg0, %arg2 : i32, i32
  }
  func.func @transform_1(%arg0: i32, %arg1: i32, %arg2: i32) -> (i32, i32) {
    %c0_i32 = arith.constant 0 : i32
    return %arg2, %arg1 : i32, i32
  }
  func.func @transform_2(%arg0: i32, %arg1: i32, %arg2: i32) -> (i32, i32) {
    %c0_i32 = arith.constant 0 : i32
    %c0_i32_0 = arith.constant 0 : i32
    return %c0_i32, %arg1 : i32, i32
  }
  func.func @transform_3(%arg0: i32, %arg1: i32, %arg2: i32) -> (i32, i32) {
    %c0_i32 = arith.constant 0 : i32
    return %arg0, %arg1 : i32, i32
  }
}

</mosaic_0001>

<llo_original>
// kernel: tpu_custom_call.1
$region0: #{tpu_custom_call.1}
  #allocation0 [shape = 'u32[]', space=smem, size = 0x4, offset = 0x4, fixed_abs, tag = 'smem constant byte address 0x4 - core index']
  #allocation1 [shape = 'u32[72,128]{1,0:T(1,128)}', space=vmem, size = 0x9000, scoped, tag = 'internal scratch']
  #allocation2 [shape = 'f32[16,256]{1,0:T(8,128)}', space=vmem, size = 0x4000, scoped, tag = 'scratch operand']
  %s0 = inlined_call_operand.hbm [shape: bf16[16,128], index: 0, kind: input, shape index: {}]
  %s1 = inlined_call_operand.hbm [shape: bf16[128,1024], index: 1, kind: input, shape index: {}]
  %s2 = inlined_call_operand.hbm [shape: f32[1,1024], index: 2, kind: input, shape index: {}]
  %s3 = inlined_call_operand.hbm [shape: f32[16,1024], index: 3, kind: output, shape index: {}]
  %s4 = sld [smem:[#allocation0]]
  $region65: #{tpu_custom_call.1} parent=0
    _
  %s6 = ssub.s32 1, %s4
  %s7 = scalar_select 0, %s6, %s4
  $region1: #{tpu_custom_call.1} parent=0
    #allocation3 [shape = 'u8[4096]{0}', space=vmem, size = 0x1000, scoped, tag = 'input window, operand 0, single buffered']
    #allocation4 [shape = 's32[2]{0}', space=sflag, size = 0x8, scoped, tag = 'scoped memory for tpu_custom_call.1']
    #allocation5 [shape = 's32[2]{0}', space=sflag, size = 0x8, scoped, tag = 'scoped memory for tpu_custom_call.1']
    #allocation6 [shape = 'u8[131072]{0}', space=vmem, size = 0x20000, scoped, tag = 'input window, operand 1']
    #allocation7 [shape = 's32[2]{0}', space=sflag, size = 0x8, scoped, tag = 'scoped memory for tpu_custom_call.1']
    #allocation8 [shape = 'u8[2048]{0}', space=vmem, size = 0x800, scoped, tag = 'input window, operand 2']
    #allocation9 [shape = 'u8[32768]{0}', space=vmem, size = 0x8000, scoped, tag = 'output window, operand 0']
    %8 = vsyncpa [#allocation4], 0
    %9 = vsyncpa [#allocation7], 0
    %s10 = scalar_lea.sflag [#allocation7], 1
    %11 = vsyncpa %s10, 0
    %12 = vsyncpa [#allocation5], 0
    %s13 = scalar_lea.sflag [#allocation5], 1
    %14 = vsyncpa %s13, 0
    loop: start=0, step=1, limit=6
    $region2: #{tpu_custom_call.1} parent=1 // loop_pre_header
      _
    $region3: #{tpu_custom_call.1} parent=1 // loop_header
      %s16 = sphi 0, %s20
      %p17 = scmp.ge.s32.totalorder %s16, 6
      %s23 = sphi 0, %s42
      %s24 = sphi 0, %s38
      %s25 = sphi 0, %s34
      %s26 = sphi 0, %s23
      %s27 = sphi 0, %s24
      %s28 = sphi 0, %s25
      %s29 = sphi 0, %s26
      %s30 = sphi 0, %s27
      %s31 = sphi 0, %s28
      %s47 = sphi 0, %s49
      %s50 = sphi 0, %s47
      %s51 = sphi 0, %s50
      %s67 = sphi 0, %s51
      %s75 = sphi 0, %s77
      %s78 = sphi 0, %s75
      %s79 = sphi 0, %s78
      %s95 = sphi 0, %s79
      %s101 = sphi 0, %s103
      %s104 = sphi 0, %s101
      %s105 = sphi 0, %s104
      %s121 = sphi 0, %s105
      %s129 = sphi 0, %s131
      %s132 = sphi 0, %s129
      %s133 = sphi 0, %s132
      %s149 = sphi 0, %s133
    $region4: #{tpu_custom_call.1} parent=1 // loop_header_branch
      %19 = sbr.rel (%p17) target = $region8
    $region5: #{tpu_custom_call.1} parent=1 // loop_body
      %s21 = ssub.s32 %s16, 1
      %s22 = ssub.s32 %s16, 2
      %s32 = sadd.s32 1, %s25
      %p33 = scmp.ge.s32.totalorder %s32, 1
      %s34 = scalar_select %p33, 0, %s32
      %s35 = sadd.s32 1, %s24
      %s36 = scalar_select %p33, %s35, %s24
      %p37 = scmp.ge.s32.totalorder %s36, 4
      %s38 = scalar_select %p37, 0, %s36
      %s39 = sadd.s32 1, %s23
      %s40 = scalar_select %p37, %s39, %s23
      %p41 = scmp.ge.s32.totalorder %s40, 1
      %s42 = scalar_select %p41, 0, %s40
      %s43 = ssub.s32 %s23, %s42
      %s44 = ssub.s32 %s25, %s34
      %s45 = sor.u32 %s43, %s44
      %p46 = scmp.eq.s32.totalorder %s45, 0
      %s48 = sadd.s32 %s47, 1
      %s49 = scalar_select %p46, %s47, %s48
      %p52 = pneg %p46
      %p53 = scmp.eq.s32.totalorder %s16, 3
      %p54 = por %p52, %p53
      %p55 = scmp.ne.s32.totalorder %s47, %s50
      %p56 = scmp.eq.s32.totalorder %s16, 0
      %p57 = por %p55, %p56
      %p58 = scmp.ne.s32.totalorder %s47, %s50
      %p59 = scmp.eq.s32.totalorder %s21, 3
      %p60 = por %p58, %p59
      %p61 = scmp.ne.s32.totalorder %s50, %s51
      %p62 = scmp.eq.s32.totalorder %s21, 0
      %p63 = por %p61, %p62
      %p64 = scmp.ne.s32.totalorder %s50, %s51
      %p65 = scmp.eq.s32.totalorder %s22, 3
      %p66 = por %p64, %p65
      %p68 = scmp.ne.s32.totalorder %s51, %s67
      %p69 = scmp.eq.s32.totalorder %s22, 0
      %p70 = por %p68, %p69
      %s71 = ssub.s32 %s25, %s34
      %s72 = ssub.s32 %s24, %s38
      %s73 = sor.u32 %s71, %s72
      %p74 = scmp.eq.s32.totalorder %s73, 0
      %s76 = sadd.s32 %s75, 1
      %s77 = scalar_select %p74, %s75, %s76
      %p80 = pneg %p74
      %p81 = scmp.eq.s32.totalorder %s16, 3
      %p82 = por %p80, %p81
      %p83 = scmp.ne.s32.totalorder %s75, %s78
      %p84 = scmp.eq.s32.totalorder %s16, 0
      %p85 = por %p83, %p84
      %p86 = scmp.ne.s32.totalorder %s75, %s78
      %p87 = scmp.eq.s32.totalorder %s21, 3
      %p88 = por %p86, %p87
      %p89 = scmp.ne.s32.totalorder %s78, %s79
      %p90 = scmp.eq.s32.totalorder %s21, 0
      %p91 = por %p89, %p90
      %p92 = scmp.ne.s32.totalorder %s78, %s79
      %p93 = scmp.eq.s32.totalorder %s22, 3
      %p94 = por %p92, %p93
      %p96 = scmp.ne.s32.totalorder %s79, %s95
      %p97 = scmp.eq.s32.totalorder %s22, 0
      %p98 = por %p96, %p97
      %s99 = ssub.s32 %s24, %s38
      %p100 = scmp.eq.s32.totalorder %s99, 0
      %s102 = sadd.s32 %s101, 1
      %s103 = scalar_select %p100, %s101, %s102
      %p106 = pneg %p100
      %p107 = scmp.eq.s32.totalorder %s16, 3
      %p108 = por %p106, %p107
      %p109 = scmp.ne.s32.totalorder %s101, %s104
      %p110 = scmp.eq.s32.totalorder %s16, 0
      %p111 = por %p109, %p110
      %p112 = scmp.ne.s32.totalorder %s101, %s104
      %p113 = scmp.eq.s32.totalorder %s21, 3
      %p114 = por %p112, %p113
      %p115 = scmp.ne.s32.totalorder %s104, %s105
      %p116 = scmp.eq.s32.totalorder %s21, 0
      %p117 = por %p115, %p116
      %p118 = scmp.ne.s32.totalorder %s104, %s105
      %p119 = scmp.eq.s32.totalorder %s22, 3
      %p120 = por %p118, %p119
      %p122 = scmp.ne.s32.totalorder %s105, %s121
      %p123 = scmp.eq.s32.totalorder %s22, 0
      %p124 = por %p122, %p123
      %s125 = ssub.s32 %s23, %s42
      %s126 = ssub.s32 %s24, %s38
      %s127 = sor.u32 %s125, %s126
      %p128 = scmp.eq.s32.totalorder %s127, 0
      %s130 = sadd.s32 %s129, 1
      %s131 = scalar_select %p128, %s129, %s130
      %p134 = pneg %p128
      %p135 = scmp.eq.s32.totalorder %s16, 3
      %p136 = por %p134, %p135
      %p137 = scmp.ne.s32.totalorder %s129, %s132
      %p138 = scmp.eq.s32.totalorder %s16, 0
      %p139 = por %p137, %p138
      %p140 = scmp.ne.s32.totalorder %s129, %s132
      %p141 = scmp.eq.s32.totalorder %s21, 3
      %p142 = por %p140, %p141
      %p143 = scmp.ne.s32.totalorder %s132, %s133
      %p144 = scmp.eq.s32.totalorder %s21, 0
      %p145 = por %p143, %p144
      %p146 = scmp.ne.s32.totalorder %s132, %s133
      %p147 = scmp.eq.s32.totalorder %s22, 3
      %p148 = por %p146, %p147
      %p150 = scmp.ne.s32.totalorder %s133, %s149
      %p151 = scmp.eq.s32.totalorder %s22, 0
      %p152 = por %p150, %p151
      %p153 = scmp.le.s32.totalorder 1, %s16
      %p154 = scmp.lt.s32.totalorder %s16, 5
      %p155 = pnand %p153, %p154
      %p156 = pneg %p155
      // Predicated region
      $region9: #{tpu_custom_call.1} parent=5 // pred_check
        _
      $region10: #{tpu_custom_call.1} parent=5 // pred_check_branch
        %158 = sbr.rel (%p155) target = $region12
      $region11: #{tpu_custom_call.1} parent=5 // pred_region
        %s159 = ssub.s32 %s16, 1
        // Predicated region
        $region13: #{tpu_custom_call.1} parent=11 // pred_check
          %p160 = pneg %p63
        $region14: #{tpu_custom_call.1} parent=11 // pred_check_branch
          %162 = sbr.rel (%p160) target = $region16
        $region15: #{tpu_custom_call.1} parent=11 // pred_region
          %s163 = smul.u32 2, %s26
          %165 = vsyncadd [#allocation4], 0
          %s166 = sadd.s32 %s28, %s163
          %s167 = smul.addr %s166, 4
          %s168 = scalar_lea.hbm %s0, %s167
          %s169 = sshll.u32 %s168, 4
          %s170 = int_to_ptr.hbm [resolvable:$true] %s169
          %s171 = sshll.u32 [#allocation3], 4
          %s172 = int_to_ptr.vmem [resolvable:$true] %s171
          %177 = dma.hbm_to_vmem [thread:$0]  %s170, 128, %s172, [#allocation4], 64, 64, 4
        $region16: #{tpu_custom_call.1} parent=11 // pred_fallthru
          _
      $region12: #{tpu_custom_call.1} parent=5 // pred_fallthru
        _
      %p178 = scmp.lt.s32.totalorder %s16, 4
      // Predicated region
      $region17: #{tpu_custom_call.1} parent=5 // pred_check
        %p179 = pneg %p178
      $region18: #{tpu_custom_call.1} parent=5 // pred_check_branch
        %181 = sbr.rel (%p179) target = $region20
      $region19: #{tpu_custom_call.1} parent=5 // pred_region
        // Predicated region
        $region21: #{tpu_custom_call.1} parent=19 // pred_check
          %p182 = pneg %p85
        $region22: #{tpu_custom_call.1} parent=19 // pred_check_branch
          %184 = sbr.rel (%p182) target = $region24
        $region23: #{tpu_custom_call.1} parent=19 // pred_region
          %s185 = sand.u32 %s16, 1
          %s186 = scalar_lea.sflag [#allocation7], %s185
          %s187 = sand.u32 %s75, 1
          %s188 = smul.addr %s187, 128
          %s189 = scalar_lea.vmem [#allocation6], %s188
          %s190 = smul.u32 16, %s25
          %s191 = smul.u32 2, %s24
          %193 = vsyncadd %s186, 0
          %s194 = smul.addr %s190, 8
          %s195 = sadd.s32 %s191, %s194
          %s196 = smul.addr %s195, 4
          %s197 = scalar_lea.hbm %s1, %s196
          %s198 = sshll.u32 %s197, 4
          %s199 = int_to_ptr.hbm [resolvable:$true] %s198
          %s200 = sshll.u32 %s189, 4
          %s201 = int_to_ptr.vmem [resolvable:$true] %s200
          %206 = dma.hbm_to_vmem [thread:$0]  %s199, 2048, %s201, %s186, 512, 128, 8
        $region24: #{tpu_custom_call.1} parent=19 // pred_fallthru
          _
        // Predicated region
        $region25: #{tpu_custom_call.1} parent=19 // pred_check
          %p207 = pneg %p111
        $region26: #{tpu_custom_call.1} parent=19 // pred_check_branch
          %209 = sbr.rel (%p207) target = $region28
        $region27: #{tpu_custom_call.1} parent=19 // pred_region
          %s210 = sand.u32 %s16, 1
          %s211 = scalar_lea.sflag [#allocation7], %s210
          %s212 = sand.u32 %s101, 1
          %s213 = smul.addr %s212, 2
          %s214 = scalar_lea.vmem [#allocation8], %s213
          %s215 = smul.u32 2, %s24
          %217 = vsyncadd %s211, 0
          %s218 = scalar_lea.hbm %s2, %s215
          %s220 = sshll.u32 %s218, 4
          %s221 = int_to_ptr.hbm [resolvable:$true] %s220
          %s222 = sshll.u32 %s214, 4
          %s223 = int_to_ptr.vmem [resolvable:$true] %s222
          %225 = dma.hbm_to_vmem [thread:$0]  %s221, 32, %s223, %s211
        $region28: #{tpu_custom_call.1} parent=19 // pred_fallthru
          _
      $region20: #{tpu_custom_call.1} parent=5 // pred_fallthru
        _
      %p226 = scmp.le.s32.totalorder 1, %s16
      %p227 = scmp.lt.s32.totalorder %s16, 5
      %p228 = pnand %p226, %p227
      %p229 = pneg %p228
      // Predicated region
      $region29: #{tpu_custom_call.1} parent=5 // pred_check
        _
      $region30: #{tpu_custom_call.1} parent=5 // pred_check_branch
        %231 = sbr.rel (%p228) target = $region32
      $region31: #{tpu_custom_call.1} parent=5 // pred_region
        %s232 = ssub.s32 %s16, 1
        // Predicated region
        $region33: #{tpu_custom_call.1} parent=31 // pred_check
          %p233 = pneg %p63
        $region34: #{tpu_custom_call.1} parent=31 // pred_check_branch
          %235 = sbr.rel (%p233) target = $region36
        $region35: #{tpu_custom_call.1} parent=31 // pred_region
          %237 = dma.done [#allocation4], 128
        $region36: #{tpu_custom_call.1} parent=31 // pred_fallthru
          _
        %s238 = sand.u32 %s21, 1
        %s239 = scalar_lea.sflag [#allocation7], %s238
        %s240 = sand.u32 %s78, 1
        %s241 = smul.addr %s240, 128
        %s242 = scalar_lea.vmem [#allocation6], %s241
        // Predicated region
        $region37: #{tpu_custom_call.1} parent=31 // pred_check
          %p243 = pneg %p91
        $region38: #{tpu_custom_call.1} parent=31 // pred_check_branch
          %245 = sbr.rel (%p243) target = $region40
        $region39: #{tpu_custom_call.1} parent=31 // pred_region
          %247 = dma.done %s239, 2048
        $region40: #{tpu_custom_call.1} parent=31 // pred_fallthru
          _
        %s248 = sand.u32 %s21, 1
        %s249 = scalar_lea.sflag [#allocation7], %s248
        %s250 = sand.u32 %s104, 1
        %s251 = smul.addr %s250, 2
        %s252 = scalar_lea.vmem [#allocation8], %s251
        // Predicated region
        $region41: #{tpu_custom_call.1} parent=31 // pred_check
          %p253 = pneg %p117
        $region42: #{tpu_custom_call.1} parent=31 // pred_check_branch
          %255 = sbr.rel (%p253) target = $region44
        $region43: #{tpu_custom_call.1} parent=31 // pred_region
          %257 = dma.done %s249, 32
        $region44: #{tpu_custom_call.1} parent=31 // pred_fallthru
          _
        %p258 = pneg %p63
        %p259 = pneg %p60
        %s260 = sand.u32 %s21, 1
        %s261 = scalar_lea.sflag [#allocation7], %s260
        %s262 = sand.u32 %s78, 1
        %s263 = smul.addr %s262, 128
        %s264 = scalar_lea.vmem [#allocation6], %s263
        %p265 = pneg %p91
        %p266 = pneg %p88
        %s267 = sand.u32 %s21, 1
        %s268 = scalar_lea.sflag [#allocation7], %s267
        %s269 = sand.u32 %s104, 1
        %s270 = smul.addr %s269, 2
        %s271 = scalar_lea.vmem [#allocation8], %s270
        %p272 = pneg %p117
        %p273 = pneg %p114
        %p274 = pneg %p145
        %p275 = pneg %p142
        %s276 = sand.u32 %s132, 1
        %s277 = scalar_lea.sflag [#allocation5], %s276
        %s278 = sand.u32 %s132, 1
        %s279 = smul.addr %s278, 32
        %s280 = scalar_lea.vmem [#allocation9], %s279
        %s281 = smul.u32 2, %s26
        %s282 = smul.u32 16, %s28
        %s283 = smul.u32 2, %s27
        %s284 = smul.u32 2, %s27
        %s285 = smul.u32 2, %s26
        %s286 = smul.u32 2, %s27
        %p287 = scmp.eq.s32.totalorder %s28, 0
        // Predicated region
        $region45: #{tpu_custom_call.1} parent=31 // pred_check
          %p288 = pneg %p287
        $region46: #{tpu_custom_call.1} parent=31 // pred_check_branch
          %290 = sbr.rel (%p288) target = $region48
        $region47: #{tpu_custom_call.1} parent=31 // pred_region
          %291 = vst [vmem:[#allocation2] sm:$0xff] 0.0
          %292 = vst [vmem:[#allocation2 + $0x8] sm:$0xff] 0.0
          %293 = vst [vmem:[#allocation2 + $0x10] sm:$0xff] 0.0
          %294 = vst [vmem:[#allocation2 + $0x18] sm:$0xff] 0.0
        $region48: #{tpu_custom_call.1} parent=31 // pred_fallthru
          _
        %v295 = vld [vmem:[#allocation2] sm:$0xff]
        %v296 = vld [vmem:[#allocation2 + $0x8] sm:$0xff]
        %v297 = vld [vmem:[#allocation2 + $0x10] sm:$0xff]
        %v298 = vld [vmem:[#allocation2 + $0x18] sm:$0xff]
        %v299 = vld [vmem:[#allocation3] sm:$0xf]
        %v300 = vld [vmem:[#allocation3 + $0x4] sm:$0xf]
        %v301 = vld [vmem:[%s242] sm:$0xff]
        %v302 = vld [vmem:[%s242 + $0x8] sm:$0xff]
        %v303 = vld [vmem:[%s242 + $0x10] sm:$0xff]
        %v304 = vld [vmem:[%s242 + $0x18] sm:$0xff]
        %v305 = vld [vmem:[%s242 + $0x20] sm:$0xff]
        %v306 = vld [vmem:[%s242 + $0x28] sm:$0xff]
        %v307 = vld [vmem:[%s242 + $0x30] sm:$0xff]
        %v308 = vld [vmem:[%s242 + $0x38] sm:$0xff]
        %v309 = vld [vmem:[%s242 + $0x40] sm:$0xff]
        %v310 = vld [vmem:[%s242 + $0x48] sm:$0xff]
        %v311 = vld [vmem:[%s242 + $0x50] sm:$0xff]
        %v312 = vld [vmem:[%s242 + $0x58] sm:$0xff]
        %v313 = vld [vmem:[%s242 + $0x60] sm:$0xff]
        %v314 = vld [vmem:[%s242 + $0x68] sm:$0xff]
        %v315 = vld [vmem:[%s242 + $0x70] sm:$0xff]
        %v316 = vld [vmem:[%s242 + $0x78] sm:$0xff]
        %v319 = vunpack.c.l.b16 %v299
        %v320 = vunpack.c.l.b16 %v300
        %v321 = vpack.c.b16 %v320, %v319
        %v339 = vunpack.c.l.b16 %v301
        %v340 = vunpack.c.h.b16 %v301
        %v341 = vunpack.c.l.b16 %v302
        %v342 = vunpack.c.h.b16 %v302
        %v343 = vunpack.c.l.b16 %v303
        %v344 = vunpack.c.h.b16 %v303
        %v345 = vunpack.c.l.b16 %v304
        %v346 = vunpack.c.h.b16 %v304
        %v347 = vunpack.c.l.b16 %v305
        %v348 = vunpack.c.h.b16 %v305
        %v349 = vunpack.c.l.b16 %v306
        %v350 = vunpack.c.h.b16 %v306
        %v351 = vunpack.c.l.b16 %v307
        %v352 = vunpack.c.h.b16 %v307
        %v353 = vunpack.c.l.b16 %v308
        %v354 = vunpack.c.h.b16 %v308
        %v355 = vunpack.c.l.b16 %v309
        %v356 = vunpack.c.h.b16 %v309
        %v357 = vunpack.c.l.b16 %v310
        %v358 = vunpack.c.h.b16 %v310
        %v359 = vunpack.c.l.b16 %v311
        %v360 = vunpack.c.h.b16 %v311
        %v361 = vunpack.c.l.b16 %v312
        %v362 = vunpack.c.h.b16 %v312
        %v363 = vunpack.c.l.b16 %v313
        %v364 = vunpack.c.h.b16 %v313
        %v365 = vunpack.c.l.b16 %v314
        %v366 = vunpack.c.h.b16 %v314
        %v367 = vunpack.c.l.b16 %v315
        %v368 = vunpack.c.h.b16 %v315
        %v369 = vunpack.c.l.b16 %v316
        %v370 = vunpack.c.h.b16 %v316
        %v371 = vpack.c.b16 %v341, %v339
        %v372 = vpack.c.b16 %v342, %v340
        %v373 = vpack.c.b16 %v345, %v343
        %v374 = vpack.c.b16 %v346, %v344
        %v375 = vpack.c.b16 %v349, %v347
        %v376 = vpack.c.b16 %v350, %v348
        %v377 = vpack.c.b16 %v353, %v351
        %v378 = vpack.c.b16 %v354, %v352
        %v379 = vpack.c.b16 %v357, %v355
        %v380 = vpack.c.b16 %v358, %v356
        %v381 = vpack.c.b16 %v361, %v359
        %v382 = vpack.c.b16 %v362, %v360
        %v383 = vpack.c.b16 %v365, %v363
        %v384 = vpack.c.b16 %v366, %v364
        %v385 = vpack.c.b16 %v369, %v367
        %v386 = vpack.c.b16 %v370, %v368
        %403 = vmatpush.bf16.msra.mxu0 %v385
        %404 = vmatpush.bf16.msra.mxu0 %v383
        %405 = vmatpush.bf16.msra.mxu0 %v381
        %406 = vmatpush.bf16.msra.mxu0 %v379
        %407 = vmatpush.bf16.msra.mxu0 %v377
        %408 = vmatpush.bf16.msra.mxu0 %v375
        %409 = vmatpush.bf16.msra.mxu0 %v373
        %410 = vmatpush.bf16.msra.mxu0 %v371
        %411 = vmatmul.bf16.gmra.mxu0 %v321
        %v412 = vpop.f32.mrf.mxu0
        %v413 = vadd.f32 0.0, %v412
        %v414 = vpop.f32.mrf.mxu0
        %v415 = vadd.f32 0.0, %v414
        %416 = vdwg.mxu0
        %417 = vmatpush.bf16.msra.mxu0 %v386
        %418 = vmatpush.bf16.msra.mxu0 %v384
        %419 = vmatpush.bf16.msra.mxu0 %v382
        %420 = vmatpush.bf16.msra.mxu0 %v380
        %421 = vmatpush.bf16.msra.mxu0 %v378
        %422 = vmatpush.bf16.msra.mxu0 %v376
        %423 = vmatpush.bf16.msra.mxu0 %v374
        %424 = vmatpush.bf16.msra.mxu0 %v372
        %425 = vmatmul.bf16.gmra.mxu0 %v321
        %v426 = vpop.f32.mrf.mxu0
        %v427 = vadd.f32 0.0, %v426
        %v428 = vpop.f32.mrf.mxu0
        %v429 = vadd.f32 0.0, %v428
        %430 = vdwg.mxu0
        %v431 = vadd.f32 %v295, %v413
        %v432 = vadd.f32 %v296, %v427
        %v433 = vadd.f32 %v297, %v415
        %v434 = vadd.f32 %v298, %v429
        %435 = vst [vmem:[#allocation2] sm:$0xff] %v431
        %436 = vst [vmem:[#allocation2 + $0x8] sm:$0xff] %v432
        %437 = vst [vmem:[#allocation2 + $0x10] sm:$0xff] %v433
        %438 = vst [vmem:[#allocation2 + $0x18] sm:$0xff] %v434
        // Predicated region
        $region49: #{tpu_custom_call.1} parent=31 // pred_check
          %p439 = pneg %p287
        $region50: #{tpu_custom_call.1} parent=31 // pred_check_branch
          %441 = sbr.rel (%p439) target = $region52
        $region51: #{tpu_custom_call.1} parent=31 // pred_region
          %v442 = vld [vmem:[#allocation2] sm:$0xff]
          %v443 = vld [vmem:[#allocation2 + $0x8] sm:$0xff]
          %v444 = vld [vmem:[#allocation2 + $0x10] sm:$0xff]
          %v445 = vld [vmem:[#allocation2 + $0x18] sm:$0xff]
          %v446 = vld [vmem:[%s252] sm:$0x3]
          %v448 = vperm.slane %v446, 0
          %v449 = vperm.slane %v446, 1
          %v452 = vadd.f32 %v442, %v448
          %v453 = vadd.f32 %v443, %v449
          %v454 = vadd.f32 %v444, %v448
          %v455 = vadd.f32 %v445, %v449
          %456 = vst [vmem:[%s280] sm:$0xff] %v452
          %457 = vst [vmem:[%s280 + $0x8] sm:$0xff] %v453
          %458 = vst [vmem:[%s280 + $0x10] sm:$0xff] %v454
          %459 = vst [vmem:[%s280 + $0x18] sm:$0xff] %v455
        $region52: #{tpu_custom_call.1} parent=31 // pred_fallthru
          _
        %s460 = sand.u32 %s132, 1
        %s461 = scalar_lea.sflag [#allocation5], %s460
        %s462 = sand.u32 %s132, 1
        %s463 = smul.addr %s462, 32
        %s464 = scalar_lea.vmem [#allocation9], %s463
        // Predicated region
        $region53: #{tpu_custom_call.1} parent=31 // pred_check
          %p465 = pneg %p142
        $region54: #{tpu_custom_call.1} parent=31 // pred_check_branch
          %467 = sbr.rel (%p465) target = $region56
        $region55: #{tpu_custom_call.1} parent=31 // pred_region
          %s468 = smul.u32 2, %s26
          %s469 = smul.u32 2, %s27
          %471 = vsyncadd %s461, 0
          %s472 = smul.addr %s468, 8
          %s473 = sadd.s32 %s469, %s472
          %s474 = smul.addr %s473, 8
          %s475 = scalar_lea.hbm %s3, %s474
          %s476 = sshll.u32 %s464, 4
          %s477 = int_to_ptr.vmem [resolvable:$true] %s476
          %s478 = sshll.u32 %s475, 4
          %s479 = int_to_ptr.hbm [resolvable:$true] %s478
          %484 = dma.vmem_to_hbm [thread:$0]  %s477, 512, %s479, %s461, 256, 1024, 16
        $region56: #{tpu_custom_call.1} parent=31 // pred_fallthru
          _
      $region32: #{tpu_custom_call.1} parent=5 // pred_fallthru
        _
      %p485 = scmp.le.s32.totalorder 2, %s16
      // Predicated region
      $region57: #{tpu_custom_call.1} parent=5 // pred_check
        %p486 = pneg %p485
      $region58: #{tpu_custom_call.1} parent=5 // pred_check_branch
        %488 = sbr.rel (%p486) target = $region60
      $region59: #{tpu_custom_call.1} parent=5 // pred_region
        %s489 = ssub.s32 %s16, 2
        // Predicated region
        $region61: #{tpu_custom_call.1} parent=59 // pred_check
          %p490 = pneg %p148
        $region62: #{tpu_custom_call.1} parent=59 // pred_check_branch
          %492 = sbr.rel (%p490) target = $region64
        $region63: #{tpu_custom_call.1} parent=59 // pred_region
          %s493 = sand.u32 %s133, 1
          %s494 = scalar_lea.sflag [#allocation5], %s493
          %s495 = sand.u32 %s133, 1
          %s496 = smul.addr %s495, 32
          %s497 = scalar_lea.vmem [#allocation9], %s496
          %499 = dma.done %s494, 512
        $region64: #{tpu_custom_call.1} parent=59 // pred_fallthru
          _
      $region60: #{tpu_custom_call.1} parent=5 // pred_fallthru
        _
    $region6: #{tpu_custom_call.1} parent=1 // loop_footer
      %s20 = sadd.s32 1, %s16
    $region7: #{tpu_custom_call.1} parent=1 // loop_footer_branch
      %15 = sbr.rel target = $region3
    $region8: #{tpu_custom_call.1} parent=1 // loop_exit
      _
    %500 = vsyncpa [#allocation4], 1
    %s501 = scalar_lea.sflag [#allocation4], 1
    %502 = vsyncpa %s501, 1
    %503 = vsyncpa [#allocation7], 1
    %s504 = scalar_lea.sflag [#allocation7], 1
    %505 = vsyncpa %s504, 1
    %506 = vsyncpa [#allocation5], 1
    %s507 = scalar_lea.sflag [#allocation5], 1
    %508 = vsyncpa %s507, 1

</llo_original>
